<compile_context>
chip_gen: v6e
topology: v6e:2x2x1
jax: 0.10.0
libtpu: 0.0.40
codegen_flags: <defaults>
</compile_context>

<pallas_src>
import jax
import jax.numpy as jnp
from jax.experimental import pallas as pl
from jax.experimental.pallas import tpu as pltpu


def _just_in_time_kernel(cp_ref, ps_ref, d_ref, lt_ref, wlt_ref, inv_ref,
                         stores_ref, wh_ref):
    base = cp_ref[0] + ps_ref[0]              # scalar int32 (SMEM, scalar-prefetch)

    d = d_ref[...]                            # (TN, S*T) f32, lane-dense demands
    lt = lt_ref[...]                          # (TN, S)   int32 store lead times
    wlt = wlt_ref[...]                        # (TN, 1)   int32 warehouse lead time
    inv = inv_ref[...]                        # (TN, 1)   f32 warehouse inventory [:,0,0]

    TN, ST = d.shape
    S = lt.shape[1]
    T = ST // S

    # time indices: torch.clip(current_period + period_shift (+ wh_lt) + lt, max=T-1)
    idx_s = jnp.minimum(base + lt, T - 1)             # (TN, S)
    idx_w = jnp.minimum(base + wlt + lt, T - 1)       # (TN, S)  (wlt broadcasts)

    # One-hot gather over the flattened (store, time) lane axis. Both gathers
    # share the same demands read and the same iota; per-store masks are built
    # with a small static loop (S is tiny) — pure VPU compare/select + XLU
    # lane reductions, no relayouts.
    t_iota = jax.lax.broadcasted_iota(jnp.int32, (TN, ST), 1)   # flat lane index
    s_iota = jax.lax.broadcasted_iota(jnp.int32, (TN, S), 1)

    store_fut = jnp.zeros((TN, S), jnp.float32)
    wh_acc = jnp.zeros((TN, 1), jnp.float32)
    for s in range(S):                                   # static, S is small
        tgt_s = idx_s[:, s:s + 1] + s * T                # (TN, 1) flat target lane
        tgt_w = idx_w[:, s:s + 1] + s * T
        g_s = jnp.sum(jnp.where(t_iota == tgt_s, d, 0.0), axis=1, keepdims=True)
        g_w = jnp.sum(jnp.where(t_iota == tgt_w, d, 0.0), axis=1, keepdims=True)
        store_fut = jnp.where(s_iota == s, g_s, store_fut)   # place into lane s
        wh_acc = wh_acc + g_w

    # torch.clip(stores_future_demands, min=0)
    store_fut = jnp.maximum(store_fut, 0.0)

    # apply_proportional_allocation: clip(total_inv / (sum + 1e-15), max=1)
    sum_alloc = jnp.sum(store_fut, axis=1, keepdims=True)          # (TN, 1)
    ratio = jnp.minimum(inv * pl.reciprocal(sum_alloc + 1e-15, approx=True), 1.0)

    stores_ref[...] = store_fut * ratio
    wh_ref[...] = jnp.maximum(wh_acc, 0.0)


def _choose_block_rows(N, ST, block_n):
    """Rows per grid step: multiple of 8, demands block capped around 4 MiB."""
    cap = max(8, ((4 << 20) // (ST * 4)) // 8 * 8)      # VMEM-aware cap (v7x-safe)
    cap = min(cap, max(8, (block_n // 8) * 8))
    if N <= cap:
        return N                                        # single block, full extent
    return cap


def just_in_time_forward(current_period, period_shift, demands, lead_times,
                         warehouse_lead_times, warehouse_inventories, *,
                         block_n=512):
    """Pallas wrapper mirroring JustInTime.forward (warehouse branch)."""
    N, S, T = demands.shape
    ST = S * T

    # Wrapper-side layout plumbing (free reshapes / slicing / casts).
    d_flat = jnp.reshape(demands.astype(jnp.float32), (N, ST))      # lane-dense
    lt = lead_times.astype(jnp.int32)                               # torch .long()
    wlt = warehouse_lead_times.astype(jnp.int32)                    # (N, 1)
    inv = warehouse_inventories[:, 0, 0:1].astype(jnp.float32)      # only [:,0,0] used
    cp = jnp.reshape(jnp.asarray(current_period, jnp.int32), (1,))
    ps = jnp.reshape(jnp.asarray(period_shift, jnp.int32), (1,))

    tn = _choose_block_rows(N, ST, block_n)
    grid = (pl.cdiv(N, tn),)

    grid_spec = pltpu.PrefetchScalarGridSpec(
        num_scalar_prefetch=2,                 # current_period, period_shift -> SMEM
        grid=grid,
        in_specs=[
            pl.BlockSpec((tn, ST), lambda i, cp, ps: (i, 0)),   # demands (flat)
            pl.BlockSpec((tn, S), lambda i, cp, ps: (i, 0)),    # lead_times
            pl.BlockSpec((tn, 1), lambda i, cp, ps: (i, 0)),    # warehouse_lead_times
            pl.BlockSpec((tn, 1), lambda i, cp, ps: (i, 0)),    # warehouse inv [:,0,0]
        ],
        out_specs=(
            pl.BlockSpec((tn, S), lambda i, cp, ps: (i, 0)),    # stores
            pl.BlockSpec((tn, 1), lambda i, cp, ps: (i, 0)),    # warehouses
        ),
    )

    stores, warehouses = pl.pallas_call(
        _just_in_time_kernel,
        out_shape=(jax.ShapeDtypeStruct((N, S), jnp.float32),
                   jax.ShapeDtypeStruct((N, 1), jnp.float32)),
        grid_spec=grid_spec,
        compiler_params=pltpu.CompilerParams(
            dimension_semantics=("parallel",)),   # per-sample work: megacore-friendly
    )(cp, ps, d_flat, lt, wlt, inv)
    return {'stores': stores, 'warehouses': warehouses}


def _reference(current_period, period_shift, demands, lead_times,
               warehouse_lead_times, warehouse_inventories):
    """Pure-JAX reference mirroring the PyTorch forward (exact division)."""
    N, S, T = demands.shape
    lt = lead_times.astype(jnp.int32)
    wlt = warehouse_lead_times.astype(jnp.int32)
    idx_s = jnp.minimum(current_period + period_shift + lt, T - 1)
    idx_w = jnp.minimum(current_period + period_shift + wlt + lt, T - 1)
    store_fut = jnp.take_along_axis(demands, idx_s[:, :, None], axis=2)[:, :, 0]
    wh_fut = jnp.take_along_axis(demands, idx_w[:, :, None], axis=2)[:, :, 0]
    wh_fut = jnp.sum(wh_fut, axis=1, keepdims=True)
    store_fut = jnp.maximum(store_fut, 0.0)
    total_inv = warehouse_inventories[:, 0, 0]
    sum_alloc = jnp.sum(store_fut, axis=1)
    ratio = jnp.minimum(total_inv / (sum_alloc + 1e-15), 1.0)
    return {'stores': store_fut * ratio[:, None],
            'warehouses': jnp.maximum(wh_fut, 0.0)}


if __name__ == "__main__":
    key = jax.random.PRNGKey(0)
    k1, k2, k3, k4 = jax.random.split(key, 4)

    N, S, T = 256, 4, 16        # num_samples, num_stores, max_lead_time
    W, K = 1, 3                 # warehouse inventory trailing dims

    demands = jax.random.normal(k1, (N, S, T), dtype=jnp.float32) * 2.0 + 3.0
    lead_times = jax.random.randint(k2, (N, S), 0, 13).astype(jnp.float32)
    warehouse_lead_times = jax.random.randint(k3, (N, 1), 1, 5).astype(jnp.float32)
    warehouse_inventories = jax.random.uniform(k4, (N, W, K), jnp.float32, 1.0, 10.0)
    current_period = 2
    period_shift = 1

    # block_n=64 so the demo actually exercises a multi-step (pipelined) grid.
    out = just_in_time_forward(current_period, period_shift, demands, lead_times,
                               warehouse_lead_times, warehouse_inventories,
                               block_n=64)
    jax.block_until_ready(out)

    ref = _reference(current_period, period_shift, demands, lead_times,
                     warehouse_lead_times, warehouse_inventories)

    # Warehouses path has no reciprocal -> tight tolerance.
    assert jnp.allclose(out['warehouses'], ref['warehouses'], atol=1e-5, rtol=1e-5)
    # Stores path uses the EUP approximate reciprocal -> slightly looser tolerance.
    assert jnp.allclose(out['stores'], ref['stores'], atol=1e-4, rtol=1e-2)

    print("KERNEL_OK")
</pallas_src>

<mosaic_0001>
module attributes {stable_mosaic.version = 11 : i64} {
  func.func @_just_in_time_kernel(%arg0: i32, %arg1: memref<1xi32, #tpu.memory_space<smem>>, %arg2: memref<1xi32, #tpu.memory_space<smem>>, %arg3: memref<64x64xf32, #tpu.memory_space<vmem>>, %arg4: memref<64x4xi32, #tpu.memory_space<vmem>>, %arg5: memref<64x1xi32, #tpu.memory_space<vmem>>, %arg6: memref<64x1xf32, #tpu.memory_space<vmem>>, %arg7: memref<64x4xf32, #tpu.memory_space<vmem>>, %arg8: memref<64x1xf32, #tpu.memory_space<vmem>>) attributes {dimension_semantics = [#tpu.dimension_semantics<parallel>], iteration_bounds = array<i64: 4>, scalar_prefetch = 2 : i64, scratch_operands = 0 : i64, tpu.core_type = #tpu.core_type<tc>, window_params = [{transform_indices = @transform_0, window_bounds = array<i64: 64, 64>}, {transform_indices = @transform_1, window_bounds = array<i64: 64, 4>}, {transform_indices = @transform_2, window_bounds = array<i64: 64, 1>}, {transform_indices = @transform_3, window_bounds = array<i64: 64, 1>}, {transform_indices = @transform_4, window_bounds = array<i64: 64, 4>}, {transform_indices = @transform_5, window_bounds = array<i64: 64, 1>}]} {
    %c0 = arith.constant 0 : index
    %0 = memref.load %arg1[%c0] : memref<1xi32, #tpu.memory_space<smem>>
    %c0_0 = arith.constant 0 : index
    %1 = memref.load %arg2[%c0_0] : memref<1xi32, #tpu.memory_space<smem>>
    %2 = arith.addi %0, %1 : i32
    %c0_1 = arith.constant 0 : index
    %c0_2 = arith.constant 0 : index
    %3 = vector.load %arg3[%c0_1, %c0_2] : memref<64x64xf32, #tpu.memory_space<vmem>>, vector<64x64xf32>
    %c0_3 = arith.constant 0 : index
    %c0_4 = arith.constant 0 : index
    %4 = vector.load %arg4[%c0_3, %c0_4] : memref<64x4xi32, #tpu.memory_space<vmem>>, vector<64x4xi32>
    %c0_5 = arith.constant 0 : index
    %c0_6 = arith.constant 0 : index
    %5 = vector.load %arg5[%c0_5, %c0_6] : memref<64x1xi32, #tpu.memory_space<vmem>>, vector<64x1xi32>
    %c0_7 = arith.constant 0 : index
    %c0_8 = arith.constant 0 : index
    %6 = vector.load %arg6[%c0_7, %c0_8] : memref<64x1xf32, #tpu.memory_space<vmem>>, vector<64x1xf32>
    %7 = vector.broadcast %2 : i32 to vector<64x4xi32>
    %8 = arith.addi %7, %4 : vector<64x4xi32>
    %c15_i32 = arith.constant 15 : i32
    %9 = vector.broadcast %c15_i32 : i32 to vector<64x4xi32>
    %10 = arith.minsi %8, %9 : vector<64x4xi32>
    %11 = vector.broadcast %2 : i32 to vector<64x1xi32>
    %12 = arith.addi %11, %5 : vector<64x1xi32>
    %13 = vector.broadcast %12 : vector<64x1xi32> to vector<64x4xi32>
    %14 = arith.addi %13, %4 : vector<64x4xi32>
    %c15_i32_9 = arith.constant 15 : i32
    %15 = vector.broadcast %c15_i32_9 : i32 to vector<64x4xi32>
    %16 = arith.minsi %14, %15 : vector<64x4xi32>
    %17 = tpu.iota {dimensions = array<i32: 1>} : vector<64x64xi32>
    %18 = tpu.iota {dimensions = array<i32: 1>} : vector<64x4xi32>
    %cst = arith.constant 0.000000e+00 : f32
    %19 = vector.broadcast %cst : f32 to vector<64x4xf32>
    %cst_10 = arith.constant 0.000000e+00 : f32
    %20 = vector.broadcast %cst_10 : f32 to vector<64x1xf32>
    %21 = vector.extract_strided_slice %10 {offsets = [0, 0], sizes = [64, 1], strides = [1, 1]} : vector<64x4xi32> to vector<64x1xi32>
    %c0_i32 = arith.constant 0 : i32
    %22 = vector.broadcast %c0_i32 : i32 to vector<64x1xi32>
    %23 = arith.addi %21, %22 : vector<64x1xi32>
    %24 = vector.extract_strided_slice %16 {offsets = [0, 0], sizes = [64, 1], strides = [1, 1]} : vector<64x4xi32> to vector<64x1xi32>
    %c0_i32_11 = arith.constant 0 : i32
    %25 = vector.broadcast %c0_i32_11 : i32 to vector<64x1xi32>
    %26 = arith.addi %24, %25 : vector<64x1xi32>
    %27 = vector.broadcast %23 : vector<64x1xi32> to vector<64x64xi32>
    %28 = arith.cmpi eq, %17, %27 : vector<64x64xi32>
    %cst_12 = arith.constant 0.000000e+00 : f32
    %29 = vector.broadcast %cst_12 : f32 to vector<64x64xf32>
    %30 = arith.select %28, %3, %29 : vector<64x64xi1>, vector<64x64xf32>
    %cst_13 = arith.constant dense<0.000000e+00> : vector<64xf32>
    %31 = vector.multi_reduction <add>, %30, %cst_13 [1] : vector<64x64xf32> to vector<64xf32>
    %32 = vector.shape_cast %31 : vector<64xf32> to vector<64x1xf32>
    %33 = vector.broadcast %26 : vector<64x1xi32> to vector<64x64xi32>
    %34 = arith.cmpi eq, %17, %33 : vector<64x64xi32>
    %cst_14 = arith.constant 0.000000e+00 : f32
    %35 = vector.broadcast %cst_14 : f32 to vector<64x64xf32>
    %36 = arith.select %34, %3, %35 : vector<64x64xi1>, vector<64x64xf32>
    %cst_15 = arith.constant dense<0.000000e+00> : vector<64xf32>
    %37 = vector.multi_reduction <add>, %36, %cst_15 [1] : vector<64x64xf32> to vector<64xf32>
    %38 = vector.shape_cast %37 : vector<64xf32> to vector<64x1xf32>
    %c0_i32_16 = arith.constant 0 : i32
    %39 = vector.broadcast %c0_i32_16 : i32 to vector<64x4xi32>
    %40 = arith.cmpi eq, %18, %39 : vector<64x4xi32>
    %41 = vector.shape_cast %32 : vector<64x1xf32> to vector<64x1xf32>
    %42 = vector.broadcast %41 : vector<64x1xf32> to vector<64x4xf32>
    %43 = arith.select %40, %42, %19 : vector<64x4xi1>, vector<64x4xf32>
    %44 = arith.addf %20, %38 : vector<64x1xf32>
    %45 = vector.extract_strided_slice %10 {offsets = [0, 1], sizes = [64, 1], strides = [1, 1]} : vector<64x4xi32> to vector<64x1xi32>
    %c16_i32 = arith.constant 16 : i32
    %46 = vector.broadcast %c16_i32 : i32 to vector<64x1xi32>
    %47 = arith.addi %45, %46 : vector<64x1xi32>
    %48 = vector.extract_strided_slice %16 {offsets = [0, 1], sizes = [64, 1], strides = [1, 1]} : vector<64x4xi32> to vector<64x1xi32>
    %c16_i32_17 = arith.constant 16 : i32
    %49 = vector.broadcast %c16_i32_17 : i32 to vector<64x1xi32>
    %50 = arith.addi %48, %49 : vector<64x1xi32>
    %51 = vector.broadcast %47 : vector<64x1xi32> to vector<64x64xi32>
    %52 = arith.cmpi eq, %17, %51 : vector<64x64xi32>
    %cst_18 = arith.constant 0.000000e+00 : f32
    %53 = vector.broadcast %cst_18 : f32 to vector<64x64xf32>
    %54 = arith.select %52, %3, %53 : vector<64x64xi1>, vector<64x64xf32>
    %cst_19 = arith.constant dense<0.000000e+00> : vector<64xf32>
    %55 = vector.multi_reduction <add>, %54, %cst_19 [1] : vector<64x64xf32> to vector<64xf32>
    %56 = vector.shape_cast %55 : vector<64xf32> to vector<64x1xf32>
    %57 = vector.broadcast %50 : vector<64x1xi32> to vector<64x64xi32>
    %58 = arith.cmpi eq, %17, %57 : vector<64x64xi32>
    %cst_20 = arith.constant 0.000000e+00 : f32
    %59 = vector.broadcast %cst_20 : f32 to vector<64x64xf32>
    %60 = arith.select %58, %3, %59 : vector<64x64xi1>, vector<64x64xf32>
    %cst_21 = arith.constant dense<0.000000e+00> : vector<64xf32>
    %61 = vector.multi_reduction <add>, %60, %cst_21 [1] : vector<64x64xf32> to vector<64xf32>
    %62 = vector.shape_cast %61 : vector<64xf32> to vector<64x1xf32>
    %c1_i32 = arith.constant 1 : i32
    %63 = vector.broadcast %c1_i32 : i32 to vector<64x4xi32>
    %64 = arith.cmpi eq, %18, %63 : vector<64x4xi32>
    %65 = vector.shape_cast %56 : vector<64x1xf32> to vector<64x1xf32>
    %66 = vector.broadcast %65 : vector<64x1xf32> to vector<64x4xf32>
    %67 = arith.select %64, %66, %43 : vector<64x4xi1>, vector<64x4xf32>
    %68 = arith.addf %44, %62 : vector<64x1xf32>
    %69 = vector.extract_strided_slice %10 {offsets = [0, 2], sizes = [64, 1], strides = [1, 1]} : vector<64x4xi32> to vector<64x1xi32>
    %c32_i32 = arith.constant 32 : i32
    %70 = vector.broadcast %c32_i32 : i32 to vector<64x1xi32>
    %71 = arith.addi %69, %70 : vector<64x1xi32>
    %72 = vector.extract_strided_slice %16 {offsets = [0, 2], sizes = [64, 1], strides = [1, 1]} : vector<64x4xi32> to vector<64x1xi32>
    %c32_i32_22 = arith.constant 32 : i32
    %73 = vector.broadcast %c32_i32_22 : i32 to vector<64x1xi32>
    %74 = arith.addi %72, %73 : vector<64x1xi32>
    %75 = vector.broadcast %71 : vector<64x1xi32> to vector<64x64xi32>
    %76 = arith.cmpi eq, %17, %75 : vector<64x64xi32>
    %cst_23 = arith.constant 0.000000e+00 : f32
    %77 = vector.broadcast %cst_23 : f32 to vector<64x64xf32>
    %78 = arith.select %76, %3, %77 : vector<64x64xi1>, vector<64x64xf32>
    %cst_24 = arith.constant dense<0.000000e+00> : vector<64xf32>
    %79 = vector.multi_reduction <add>, %78, %cst_24 [1] : vector<64x64xf32> to vector<64xf32>
    %80 = vector.shape_cast %79 : vector<64xf32> to vector<64x1xf32>
    %81 = vector.broadcast %74 : vector<64x1xi32> to vector<64x64xi32>
    %82 = arith.cmpi eq, %17, %81 : vector<64x64xi32>
    %cst_25 = arith.constant 0.000000e+00 : f32
    %83 = vector.broadcast %cst_25 : f32 to vector<64x64xf32>
    %84 = arith.select %82, %3, %83 : vector<64x64xi1>, vector<64x64xf32>
    %cst_26 = arith.constant dense<0.000000e+00> : vector<64xf32>
    %85 = vector.multi_reduction <add>, %84, %cst_26 [1] : vector<64x64xf32> to vector<64xf32>
    %86 = vector.shape_cast %85 : vector<64xf32> to vector<64x1xf32>
    %c2_i32 = arith.constant 2 : i32
    %87 = vector.broadcast %c2_i32 : i32 to vector<64x4xi32>
    %88 = arith.cmpi eq, %18, %87 : vector<64x4xi32>
    %89 = vector.shape_cast %80 : vector<64x1xf32> to vector<64x1xf32>
    %90 = vector.broadcast %89 : vector<64x1xf32> to vector<64x4xf32>
    %91 = arith.select %88, %90, %67 : vector<64x4xi1>, vector<64x4xf32>
    %92 = arith.addf %68, %86 : vector<64x1xf32>
    %93 = vector.extract_strided_slice %10 {offsets = [0, 3], sizes = [64, 1], strides = [1, 1]} : vector<64x4xi32> to vector<64x1xi32>
    %c48_i32 = arith.constant 48 : i32
    %94 = vector.broadcast %c48_i32 : i32 to vector<64x1xi32>
    %95 = arith.addi %93, %94 : vector<64x1xi32>
    %96 = vector.extract_strided_slice %16 {offsets = [0, 3], sizes = [64, 1], strides = [1, 1]} : vector<64x4xi32> to vector<64x1xi32>
    %c48_i32_27 = arith.constant 48 : i32
    %97 = vector.broadcast %c48_i32_27 : i32 to vector<64x1xi32>
    %98 = arith.addi %96, %97 : vector<64x1xi32>
    %99 = vector.broadcast %95 : vector<64x1xi32> to vector<64x64xi32>
    %100 = arith.cmpi eq, %17, %99 : vector<64x64xi32>
    %cst_28 = arith.constant 0.000000e+00 : f32
    %101 = vector.broadcast %cst_28 : f32 to vector<64x64xf32>
    %102 = arith.select %100, %3, %101 : vector<64x64xi1>, vector<64x64xf32>
    %cst_29 = arith.constant dense<0.000000e+00> : vector<64xf32>
    %103 = vector.multi_reduction <add>, %102, %cst_29 [1] : vector<64x64xf32> to vector<64xf32>
    %104 = vector.shape_cast %103 : vector<64xf32> to vector<64x1xf32>
    %105 = vector.broadcast %98 : vector<64x1xi32> to vector<64x64xi32>
    %106 = arith.cmpi eq, %17, %105 : vector<64x64xi32>
    %cst_30 = arith.constant 0.000000e+00 : f32
    %107 = vector.broadcast %cst_30 : f32 to vector<64x64xf32>
    %108 = arith.select %106, %3, %107 : vector<64x64xi1>, vector<64x64xf32>
    %cst_31 = arith.constant dense<0.000000e+00> : vector<64xf32>
    %109 = vector.multi_reduction <add>, %108, %cst_31 [1] : vector<64x64xf32> to vector<64xf32>
    %110 = vector.shape_cast %109 : vector<64xf32> to vector<64x1xf32>
    %c3_i32 = arith.constant 3 : i32
    %111 = vector.broadcast %c3_i32 : i32 to vector<64x4xi32>
    %112 = arith.cmpi eq, %18, %111 : vector<64x4xi32>
    %113 = vector.shape_cast %104 : vector<64x1xf32> to vector<64x1xf32>
    %114 = vector.broadcast %113 : vector<64x1xf32> to vector<64x4xf32>
    %115 = arith.select %112, %114, %91 : vector<64x4xi1>, vector<64x4xf32>
    %116 = arith.addf %92, %110 : vector<64x1xf32>
    %cst_32 = arith.constant 0.000000e+00 : f32
    %117 = vector.broadcast %cst_32 : f32 to vector<64x4xf32>
    %118 = arith.maximumf %115, %117 : vector<64x4xf32>
    %cst_33 = arith.constant dense<0.000000e+00> : vector<64xf32>
    %119 = vector.multi_reduction <add>, %118, %cst_33 [1] : vector<64x4xf32> to vector<64xf32>
    %120 = vector.shape_cast %119 : vector<64xf32> to vector<64x1xf32>
    %cst_34 = arith.constant 1.000000e-15 : f32
    %121 = vector.broadcast %cst_34 : f32 to vector<64x1xf32>
    %122 = arith.addf %120, %121 : vector<64x1xf32>
    %123 = tpu.reciprocal %122 {approx = true} : vector<64x1xf32> -> vector<64x1xf32>
    %124 = arith.mulf %6, %123 : vector<64x1xf32>
    %cst_35 = arith.constant 1.000000e+00 : f32
    %125 = vector.broadcast %cst_35 : f32 to vector<64x1xf32>
    %126 = arith.minimumf %124, %125 : vector<64x1xf32>
    %127 = vector.broadcast %126 : vector<64x1xf32> to vector<64x4xf32>
    %128 = arith.mulf %118, %127 : vector<64x4xf32>
    %c0_36 = arith.constant 0 : index
    %c0_37 = arith.constant 0 : index
    %129 = vector.load %arg7[%c0_36, %c0_37] : memref<64x4xf32, #tpu.memory_space<vmem>>, vector<64x4xf32>
    tpu.vector_store %arg7[%c0_36, %c0_37], %128 {strides = array<i32>} : memref<64x4xf32, #tpu.memory_space<vmem>>, vector<64x4xf32>,
    %cst_38 = arith.constant 0.000000e+00 : f32
    %130 = vector.broadcast %cst_38 : f32 to vector<64x1xf32>
    %131 = arith.maximumf %116, %130 : vector<64x1xf32>
    %c0_39 = arith.constant 0 : index
    %c0_40 = arith.constant 0 : index
    %132 = vector.load %arg8[%c0_39, %c0_40] : memref<64x1xf32, #tpu.memory_space<vmem>>, vector<64x1xf32>
    tpu.vector_store %arg8[%c0_39, %c0_40], %131 {strides = array<i32>} : memref<64x1xf32, #tpu.memory_space<vmem>>, vector<64x1xf32>,
    return
  }
  func.func @transform_0(%arg0: i32, %arg1: memref<1xi32, #tpu.memory_space<smem>>, %arg2: memref<1xi32, #tpu.memory_space<smem>>) -> (i32, i32) {
    %c0_i32 = arith.constant 0 : i32
    %c0_i32_0 = arith.constant 0 : i32
    return %arg0, %c0_i32 : i32, i32
  }
  func.func @transform_1(%arg0: i32, %arg1: memref<1xi32, #tpu.memory_space<smem>>, %arg2: memref<1xi32, #tpu.memory_space<smem>>) -> (i32, i32) {
    %c0_i32 = arith.constant 0 : i32
    %c0_i32_0 = arith.constant 0 : i32
    return %arg0, %c0_i32 : i32, i32
  }
  func.func @transform_2(%arg0: i32, %arg1: memref<1xi32, #tpu.memory_space<smem>>, %arg2: memref<1xi32, #tpu.memory_space<smem>>) -> (i32, i32) {
    %c0_i32 = arith.constant 0 : i32
    %c0_i32_0 = arith.constant 0 : i32
    return %arg0, %c0_i32 : i32, i32
  }
  func.func @transform_3(%arg0: i32, %arg1: memref<1xi32, #tpu.memory_space<smem>>, %arg2: memref<1xi32, #tpu.memory_space<smem>>) -> (i32, i32) {
    %c0_i32 = arith.constant 0 : i32
    %c0_i32_0 = arith.constant 0 : i32
    return %arg0, %c0_i32 : i32, i32
  }
  func.func @transform_4(%arg0: i32, %arg1: memref<1xi32, #tpu.memory_space<smem>>, %arg2: memref<1xi32, #tpu.memory_space<smem>>) -> (i32, i32) {
    %c0_i32 = arith.constant 0 : i32
    %c0_i32_0 = arith.constant 0 : i32
    return %arg0, %c0_i32 : i32, i32
  }
  func.func @transform_5(%arg0: i32, %arg1: memref<1xi32, #tpu.memory_space<smem>>, %arg2: memref<1xi32, #tpu.memory_space<smem>>) -> (i32, i32) {
    %c0_i32 = arith.constant 0 : i32
    %c0_i32_0 = arith.constant 0 : i32
    return %arg0, %c0_i32 : i32, i32
  }
}

</mosaic_0001>

<llo_original>
// kernel: tpu_custom_call.1
$region0: #{tpu_custom_call.1}
  #allocation0 [shape = 'u32[]', space=smem, size = 0x4, offset = 0x4, fixed_abs, tag = 'smem constant byte address 0x4 - core index']
  #allocation1 [shape = 'u32[144,128]{1,0:T(1,128)}', space=vmem, size = 0x12000, scoped, tag = 'internal scratch']
  #allocation2 [shape = 's32[1]{0}', space=sflag, size = 0x4, scoped, tag = 'scoped memory for tpu_custom_call.1']
  #allocation3 [shape = 's32[1]{0:T(128)S(6)}', space=smem, size = 0x200, scoped, tag = 'prefetched SMEM operand 0']
  #allocation4 [shape = 's32[1]{0:T(128)S(6)}', space=smem, size = 0x200, scoped, tag = 'prefetched SMEM operand 1']
  %s0 = inlined_call_operand.<no memory space> [shape: s32[1], index: 0, kind: input, shape index: {}]
  %s1 = inlined_call_operand.<no memory space> [shape: s32[1], index: 1, kind: input, shape index: {}]
  %s2 = inlined_call_operand.vmem [shape: f32[256,64], index: 2, kind: input, shape index: {}]
  %s3 = inlined_call_operand.vmem [shape: s32[256,4], index: 3, kind: input, shape index: {}]
  %s4 = inlined_call_operand.vmem [shape: s32[256,1], index: 4, kind: input, shape index: {}]
  %s5 = inlined_call_operand.vmem [shape: f32[256,1], index: 5, kind: input, shape index: {}]
  %s6 = inlined_call_operand.vmem [shape: f32[256,4], index: 6, kind: output, shape index: {0}]
  %s7 = inlined_call_operand.vmem [shape: f32[256,1], index: 7, kind: output, shape index: {1}]
  %8 = xla_tuple %s6, %s7
  %s9 = sld [smem:[#allocation0]]
  $region57: #{tpu_custom_call.1} parent=0
    _
  %s11 = ssub.s32 1, %s9
  %s12 = scalar_select 0, %s11, %s9
  %13 = sst [smem:[#allocation3]] %s0
  %14 = sst [smem:[#allocation4]] %s1
  loop: start=0, step=1, limit=6
  $region2: #{tpu_custom_call.1} parent=0 // loop_pre_header
    _
  $region3: #{tpu_custom_call.1} parent=0 // loop_header
    %s16 = sphi 0, %s20
    %p17 = scmp.ge.s32.totalorder %s16, 6
    %s26 = sphi 0, %s28
    %s29 = sphi 0, %s26
    %s30 = sphi 0, %s29
    %s46 = sphi 0, %s30
    %s52 = sphi 0, %s54
    %s55 = sphi 0, %s52
    %s56 = sphi 0, %s55
    %s72 = sphi 0, %s56
    %s78 = sphi 0, %s80
    %s81 = sphi 0, %s78
    %s82 = sphi 0, %s81
    %s98 = sphi 0, %s82
    %s104 = sphi 0, %s106
    %s107 = sphi 0, %s104
    %s108 = sphi 0, %s107
    %s124 = sphi 0, %s108
    %s130 = sphi 0, %s132
    %s133 = sphi 0, %s130
    %s134 = sphi 0, %s133
    %s150 = sphi 0, %s134
    %s156 = sphi 0, %s158
    %s159 = sphi 0, %s156
    %s160 = sphi 0, %s159
    %s176 = sphi 0, %s160
  $region4: #{tpu_custom_call.1} parent=0 // loop_header_branch
    %19 = sbr.rel (%p17) target = $region8
  $region5: #{tpu_custom_call.1} parent=0 // loop_body
    %s21 = ssub.s32 %s16, 1
    %s22 = ssub.s32 %s16, 2
    %s23 = sadd.s32 %s16, 1
    %s24 = ssub.s32 %s16, %s23
    %p25 = scmp.eq.s32.totalorder %s24, 0
    %s27 = sadd.s32 %s26, 1
    %s28 = scalar_select %p25, %s26, %s27
    %p31 = pneg %p25
    %p32 = scmp.eq.s32.totalorder %s16, 3
    %p33 = por %p31, %p32
    %p34 = scmp.ne.s32.totalorder %s26, %s29
    %p35 = scmp.eq.s32.totalorder %s16, 0
    %p36 = por %p34, %p35
    %p37 = scmp.ne.s32.totalorder %s26, %s29
    %p38 = scmp.eq.s32.totalorder %s21, 3
    %p39 = por %p37, %p38
    %p40 = scmp.ne.s32.totalorder %s29, %s30
    %p41 = scmp.eq.s32.totalorder %s21, 0
    %p42 = por %p40, %p41
    %p43 = scmp.ne.s32.totalorder %s29, %s30
    %p44 = scmp.eq.s32.totalorder %s22, 3
    %p45 = por %p43, %p44
    %p47 = scmp.ne.s32.totalorder %s30, %s46
    %p48 = scmp.eq.s32.totalorder %s22, 0
    %p49 = por %p47, %p48
    %s50 = ssub.s32 %s16, %s23
    %p51 = scmp.eq.s32.totalorder %s50, 0
    %s53 = sadd.s32 %s52, 1
    %s54 = scalar_select %p51, %s52, %s53
    %p57 = pneg %p51
    %p58 = scmp.eq.s32.totalorder %s16, 3
    %p59 = por %p57, %p58
    %p60 = scmp.ne.s32.totalorder %s52, %s55
    %p61 = scmp.eq.s32.totalorder %s16, 0
    %p62 = por %p60, %p61
    %p63 = scmp.ne.s32.totalorder %s52, %s55
    %p64 = scmp.eq.s32.totalorder %s21, 3
    %p65 = por %p63, %p64
    %p66 = scmp.ne.s32.totalorder %s55, %s56
    %p67 = scmp.eq.s32.totalorder %s21, 0
    %p68 = por %p66, %p67
    %p69 = scmp.ne.s32.totalorder %s55, %s56
    %p70 = scmp.eq.s32.totalorder %s22, 3
    %p71 = por %p69, %p70
    %p73 = scmp.ne.s32.totalorder %s56, %s72
    %p74 = scmp.eq.s32.totalorder %s22, 0
    %p75 = por %p73, %p74
    %s76 = ssub.s32 %s16, %s23
    %p77 = scmp.eq.s32.totalorder %s76, 0
    %s79 = sadd.s32 %s78, 1
    %s80 = scalar_select %p77, %s78, %s79
    %p83 = pneg %p77
    %p84 = scmp.eq.s32.totalorder %s16, 3
    %p85 = por %p83, %p84
    %p86 = scmp.ne.s32.totalorder %s78, %s81
    %p87 = scmp.eq.s32.totalorder %s16, 0
    %p88 = por %p86, %p87
    %p89 = scmp.ne.s32.totalorder %s78, %s81
    %p90 = scmp.eq.s32.totalorder %s21, 3
    %p91 = por %p89, %p90
    %p92 = scmp.ne.s32.totalorder %s81, %s82
    %p93 = scmp.eq.s32.totalorder %s21, 0
    %p94 = por %p92, %p93
    %p95 = scmp.ne.s32.totalorder %s81, %s82
    %p96 = scmp.eq.s32.totalorder %s22, 3
    %p97 = por %p95, %p96
    %p99 = scmp.ne.s32.totalorder %s82, %s98
    %p100 = scmp.eq.s32.totalorder %s22, 0
    %p101 = por %p99, %p100
    %s102 = ssub.s32 %s16, %s23
    %p103 = scmp.eq.s32.totalorder %s102, 0
    %s105 = sadd.s32 %s104, 1
    %s106 = scalar_select %p103, %s104, %s105
    %p109 = pneg %p103
    %p110 = scmp.eq.s32.totalorder %s16, 3
    %p111 = por %p109, %p110
    %p112 = scmp.ne.s32.totalorder %s104, %s107
    %p113 = scmp.eq.s32.totalorder %s16, 0
    %p114 = por %p112, %p113
    %p115 = scmp.ne.s32.totalorder %s104, %s107
    %p116 = scmp.eq.s32.totalorder %s21, 3
    %p117 = por %p115, %p116
    %p118 = scmp.ne.s32.totalorder %s107, %s108
    %p119 = scmp.eq.s32.totalorder %s21, 0
    %p120 = por %p118, %p119
    %p121 = scmp.ne.s32.totalorder %s107, %s108
    %p122 = scmp.eq.s32.totalorder %s22, 3
    %p123 = por %p121, %p122
    %p125 = scmp.ne.s32.totalorder %s108, %s124
    %p126 = scmp.eq.s32.totalorder %s22, 0
    %p127 = por %p125, %p126
    %s128 = ssub.s32 %s16, %s23
    %p129 = scmp.eq.s32.totalorder %s128, 0
    %s131 = sadd.s32 %s130, 1
    %s132 = scalar_select %p129, %s130, %s131
    %p135 = pneg %p129
    %p136 = scmp.eq.s32.totalorder %s16, 3
    %p137 = por %p135, %p136
    %p138 = scmp.ne.s32.totalorder %s130, %s133
    %p139 = scmp.eq.s32.totalorder %s16, 0
    %p140 = por %p138, %p139
    %p141 = scmp.ne.s32.totalorder %s130, %s133
    %p142 = scmp.eq.s32.totalorder %s21, 3
    %p143 = por %p141, %p142
    %p144 = scmp.ne.s32.totalorder %s133, %s134
    %p145 = scmp.eq.s32.totalorder %s21, 0
    %p146 = por %p144, %p145
    %p147 = scmp.ne.s32.totalorder %s133, %s134
    %p148 = scmp.eq.s32.totalorder %s22, 3
    %p149 = por %p147, %p148
    %p151 = scmp.ne.s32.totalorder %s134, %s150
    %p152 = scmp.eq.s32.totalorder %s22, 0
    %p153 = por %p151, %p152
    %s154 = ssub.s32 %s16, %s23
    %p155 = scmp.eq.s32.totalorder %s154, 0
    %s157 = sadd.s32 %s156, 1
    %s158 = scalar_select %p155, %s156, %s157
    %p161 = pneg %p155
    %p162 = scmp.eq.s32.totalorder %s16, 3
    %p163 = por %p161, %p162
    %p164 = scmp.ne.s32.totalorder %s156, %s159
    %p165 = scmp.eq.s32.totalorder %s16, 0
    %p166 = por %p164, %p165
    %p167 = scmp.ne.s32.totalorder %s156, %s159
    %p168 = scmp.eq.s32.totalorder %s21, 3
    %p169 = por %p167, %p168
    %p170 = scmp.ne.s32.totalorder %s159, %s160
    %p171 = scmp.eq.s32.totalorder %s21, 0
    %p172 = por %p170, %p171
    %p173 = scmp.ne.s32.totalorder %s159, %s160
    %p174 = scmp.eq.s32.totalorder %s22, 3
    %p175 = por %p173, %p174
    %p177 = scmp.ne.s32.totalorder %s160, %s176
    %p178 = scmp.eq.s32.totalorder %s22, 0
    %p179 = por %p177, %p178
    %p180 = scmp.le.s32.totalorder 1, %s16
    %p181 = scmp.lt.s32.totalorder %s16, 5
    %p182 = pnand %p180, %p181
    %p183 = pneg %p182
    // Predicated region
    $region9: #{tpu_custom_call.1} parent=5 // pred_check
      _
    $region10: #{tpu_custom_call.1} parent=5 // pred_check_branch
      %185 = sbr.rel (%p182) target = $region12
    $region11: #{tpu_custom_call.1} parent=5 // pred_region
      %s186 = ssub.s32 %s16, 1
    $region12: #{tpu_custom_call.1} parent=5 // pred_fallthru
      _
    %p187 = scmp.lt.s32.totalorder %s16, 4
    // Predicated region
    $region13: #{tpu_custom_call.1} parent=5 // pred_check
      %p188 = pneg %p187
    $region14: #{tpu_custom_call.1} parent=5 // pred_check_branch
      %190 = sbr.rel (%p188) target = $region16
    $region15: #{tpu_custom_call.1} parent=5 // pred_region
      // Predicated region
      $region17: #{tpu_custom_call.1} parent=15 // pred_check
        %p191 = pneg %p36
      $region18: #{tpu_custom_call.1} parent=15 // pred_check_branch
        %193 = sbr.rel (%p191) target = $region20
      $region19: #{tpu_custom_call.1} parent=15 // pred_region
        %s194 = smul.u32 8, %s16
        %p195 = scmp.lt.s32.totalorder %s194, 31
        %s196 = scalar_select %p195, %s194, 31
        %s197 = smul.addr %s196, 8
        %s198 = scalar_lea.vmem %s2, %s197
        %s199 = smul.u32 8, %s16
      $region20: #{tpu_custom_call.1} parent=15 // pred_fallthru
        _
      // Predicated region
      $region21: #{tpu_custom_call.1} parent=15 // pred_check
        %p200 = pneg %p62
      $region22: #{tpu_custom_call.1} parent=15 // pred_check_branch
        %202 = sbr.rel (%p200) target = $region24
      $region23: #{tpu_custom_call.1} parent=15 // pred_region
        %s203 = smul.u32 8, %s16
        %p204 = scmp.lt.s32.totalorder %s203, 31
        %s205 = scalar_select %p204, %s203, 31
        %s206 = smul.addr %s205, 8
        %s207 = scalar_lea.vmem %s3, %s206
        %s208 = smul.u32 8, %s16
      $region24: #{tpu_custom_call.1} parent=15 // pred_fallthru
        _
      // Predicated region
      $region25: #{tpu_custom_call.1} parent=15 // pred_check
        %p209 = pneg %p88
      $region26: #{tpu_custom_call.1} parent=15 // pred_check_branch
        %211 = sbr.rel (%p209) target = $region28
      $region27: #{tpu_custom_call.1} parent=15 // pred_region
        %s212 = smul.u32 8, %s16
        %p213 = scmp.lt.s32.totalorder %s212, 31
        %s214 = scalar_select %p213, %s212, 31
        %s215 = smul.addr %s214, 8
        %s216 = scalar_lea.vmem %s4, %s215
        %s217 = smul.u32 8, %s16
      $region28: #{tpu_custom_call.1} parent=15 // pred_fallthru
        _
      // Predicated region
      $region29: #{tpu_custom_call.1} parent=15 // pred_check
        %p218 = pneg %p114
      $region30: #{tpu_custom_call.1} parent=15 // pred_check_branch
        %220 = sbr.rel (%p218) target = $region32
      $region31: #{tpu_custom_call.1} parent=15 // pred_region
        %s221 = smul.u32 8, %s16
        %p222 = scmp.lt.s32.totalorder %s221, 31
        %s223 = scalar_select %p222, %s221, 31
        %s224 = smul.addr %s223, 8
        %s225 = scalar_lea.vmem %s5, %s224
        %s226 = smul.u32 8, %s16
      $region32: #{tpu_custom_call.1} parent=15 // pred_fallthru
        _
    $region16: #{tpu_custom_call.1} parent=5 // pred_fallthru
      _
    %p227 = scmp.le.s32.totalorder 1, %s16
    %p228 = scmp.lt.s32.totalorder %s16, 5
    %p229 = pnand %p227, %p228
    %p230 = pneg %p229
    // Predicated region
    $region33: #{tpu_custom_call.1} parent=5 // pred_check
      _
    $region34: #{tpu_custom_call.1} parent=5 // pred_check_branch
      %232 = sbr.rel (%p229) target = $region36
    $region35: #{tpu_custom_call.1} parent=5 // pred_region
      %s233 = ssub.s32 %s16, 1
      %s234 = smul.u32 8, %s21
      %p235 = scmp.lt.s32.totalorder %s234, 31
      %s236 = scalar_select %p235, %s234, 31
      %s237 = smul.addr %s236, 8
      %s238 = scalar_lea.vmem %s2, %s237
      %p239 = pneg %p42
      %p240 = pneg %p39
      %s241 = smul.u32 8, %s21
      %p242 = scmp.lt.s32.totalorder %s241, 31
      %s243 = scalar_select %p242, %s241, 31
      %s244 = smul.addr %s243, 8
      %s245 = scalar_lea.vmem %s3, %s244
      %p246 = pneg %p68
      %p247 = pneg %p65
      %s248 = smul.u32 8, %s21
      %p249 = scmp.lt.s32.totalorder %s248, 31
      %s250 = scalar_select %p249, %s248, 31
      %s251 = smul.addr %s250, 8
      %s252 = scalar_lea.vmem %s4, %s251
      %p253 = pneg %p94
      %p254 = pneg %p91
      %s255 = smul.u32 8, %s21
      %p256 = scmp.lt.s32.totalorder %s255, 31
      %s257 = scalar_select %p256, %s255, 31
      %s258 = smul.addr %s257, 8
      %s259 = scalar_lea.vmem %s5, %s258
      %p260 = pneg %p120
      %p261 = pneg %p117
      %p262 = pneg %p146
      %p263 = pneg %p143
      %s264 = smul.u32 8, %s21
      %p265 = scmp.lt.s32.totalorder %s264, 31
      %s266 = scalar_select %p265, %s264, 31
      %s267 = smul.addr %s266, 8
      %s268 = scalar_lea.vmem %s6, %s267
      %p269 = pneg %p172
      %p270 = pneg %p169
      %s271 = smul.u32 8, %s21
      %p272 = scmp.lt.s32.totalorder %s271, 31
      %s273 = scalar_select %p272, %s271, 31
      %s274 = smul.addr %s273, 8
      %s275 = scalar_lea.vmem %s7, %s274
      %s276 = smul.u32 8, %s21
      %p277 = scmp.lt.s32.totalorder %s276, 31
      %s278 = scalar_select %p277, %s276, 31
      %s279 = smul.addr %s278, 8
      %s280 = scalar_lea.vmem %s2, %s279
      %s281 = smul.u32 8, %s21
      %s282 = smul.u32 8, %s21
      %p283 = scmp.lt.s32.totalorder %s282, 31
      %s284 = scalar_select %p283, %s282, 31
      %s285 = smul.addr %s284, 8
      %s286 = scalar_lea.vmem %s3, %s285
      %s287 = smul.u32 8, %s21
      %s288 = smul.u32 8, %s21
      %p289 = scmp.lt.s32.totalorder %s288, 31
      %s290 = scalar_select %p289, %s288, 31
      %s291 = smul.addr %s290, 8
      %s292 = scalar_lea.vmem %s4, %s291
      %s293 = smul.u32 8, %s21
      %s294 = smul.u32 8, %s21
      %p295 = scmp.lt.s32.totalorder %s294, 31
      %s296 = scalar_select %p295, %s294, 31
      %s297 = smul.addr %s296, 8
      %s298 = scalar_lea.vmem %s5, %s297
      %s299 = smul.u32 8, %s21
      %s300 = smul.u32 8, %s21
      %p301 = scmp.lt.s32.totalorder %s300, 31
      %s302 = scalar_select %p301, %s300, 31
      %s303 = smul.addr %s302, 8
      %s304 = scalar_lea.vmem %s6, %s303
      %s305 = smul.u32 8, %s21
      %s306 = smul.u32 8, %s21
      %p307 = scmp.lt.s32.totalorder %s306, 31
      %s308 = scalar_select %p307, %s306, 31
      %s309 = smul.addr %s308, 8
      %s310 = scalar_lea.vmem %s7, %s309
      %s311 = smul.u32 8, %s21
      %s312 = sld [smem:[#allocation3]]
      %s313 = sld [smem:[#allocation4]]
      %s314 = sadd.s32 %s312, %s313
      %v315 = vld [vmem:[%s280] sm:$0xff]
      %v316 = vld [vmem:[%s280 + $0x8] sm:$0xff]
      %v317 = vld [vmem:[%s280 + $0x10] sm:$0xff]
      %v318 = vld [vmem:[%s280 + $0x18] sm:$0xff]
      %v319 = vld [vmem:[%s280 + $0x20] sm:$0xff]
      %v320 = vld [vmem:[%s280 + $0x28] sm:$0xff]
      %v321 = vld [vmem:[%s280 + $0x30] sm:$0xff]
      %v322 = vld [vmem:[%s280 + $0x38] sm:$0xff]
      %v323 = vld [vmem:[%s286] sm:$0xff]
      %v324 = vld [vmem:[%s286 + $0x8] sm:$0xff]
      %v325 = vld [vmem:[%s286 + $0x10] sm:$0xff]
      %v326 = vld [vmem:[%s286 + $0x18] sm:$0xff]
      %v327 = vld [vmem:[%s286 + $0x20] sm:$0xff]
      %v328 = vld [vmem:[%s286 + $0x28] sm:$0xff]
      %v329 = vld [vmem:[%s286 + $0x30] sm:$0xff]
      %v330 = vld [vmem:[%s286 + $0x38] sm:$0xff]
      %v331 = vld [vmem:[%s292] sm:$0xff]
      %v332 = vld [vmem:[%s292 + $0x8] sm:$0xff]
      %v333 = vld [vmem:[%s292 + $0x10] sm:$0xff]
      %v334 = vld [vmem:[%s292 + $0x18] sm:$0xff]
      %v335 = vld [vmem:[%s292 + $0x20] sm:$0xff]
      %v336 = vld [vmem:[%s292 + $0x28] sm:$0xff]
      %v337 = vld [vmem:[%s292 + $0x30] sm:$0xff]
      %v338 = vld [vmem:[%s292 + $0x38] sm:$0xff]
      %v339 = vld [vmem:[%s298] sm:$0xff]
      %v340 = vld [vmem:[%s298 + $0x8] sm:$0xff]
      %v341 = vld [vmem:[%s298 + $0x10] sm:$0xff]
      %v342 = vld [vmem:[%s298 + $0x18] sm:$0xff]
      %v343 = vld [vmem:[%s298 + $0x20] sm:$0xff]
      %v344 = vld [vmem:[%s298 + $0x28] sm:$0xff]
      %v345 = vld [vmem:[%s298 + $0x30] sm:$0xff]
      %v346 = vld [vmem:[%s298 + $0x38] sm:$0xff]
      %v347 = vstv %s314
      %v348 = vadd.s32 %v347, %v323
      %v349 = vadd.s32 %v347, %v324
      %v350 = vadd.s32 %v347, %v325
      %v351 = vadd.s32 %v347, %v326
      %v352 = vadd.s32 %v347, %v327
      %v353 = vadd.s32 %v347, %v328
      %v354 = vadd.s32 %v347, %v329
      %v355 = vadd.s32 %v347, %v330
      %vm356 = vcmp.lt.s32.totalorder %v348, 15
      %v357 = vsel %vm356, %v348, 15
      %vm358 = vcmp.lt.s32.totalorder %v349, 15
      %v359 = vsel %vm358, %v349, 15
      %vm360 = vcmp.lt.s32.totalorder %v350, 15
      %v361 = vsel %vm360, %v350, 15
      %vm362 = vcmp.lt.s32.totalorder %v351, 15
      %v363 = vsel %vm362, %v351, 15
      %vm364 = vcmp.lt.s32.totalorder %v352, 15
      %v365 = vsel %vm364, %v352, 15
      %vm366 = vcmp.lt.s32.totalorder %v353, 15
      %v367 = vsel %vm366, %v353, 15
      %vm368 = vcmp.lt.s32.totalorder %v354, 15
      %v369 = vsel %vm368, %v354, 15
      %vm370 = vcmp.lt.s32.totalorder %v355, 15
      %v371 = vsel %vm370, %v355, 15
      %v372 = vadd.s32 %v347, %v331
      %v373 = vadd.s32 %v347, %v332
      %v374 = vadd.s32 %v347, %v333
      %v375 = vadd.s32 %v347, %v334
      %v376 = vadd.s32 %v347, %v335
      %v377 = vadd.s32 %v347, %v336
      %v378 = vadd.s32 %v347, %v337
      %v379 = vadd.s32 %v347, %v338
      %380 = vset.pattern.permute.xlu0 0
      %381 = vperm.xlu0 %380, %v372
      %v382 = vpop.permute.xlu0 %381
      %383 = vset.pattern.permute.xlu0 0
      %384 = vperm.xlu0 %383, %v373
      %v385 = vpop.permute.xlu0 %384
      %386 = vset.pattern.permute.xlu0 0
      %387 = vperm.xlu0 %386, %v374
      %v388 = vpop.permute.xlu0 %387
      %389 = vset.pattern.permute.xlu0 0
      %390 = vperm.xlu0 %389, %v375
      %v391 = vpop.permute.xlu0 %390
      %392 = vset.pattern.permute.xlu0 0
      %393 = vperm.xlu0 %392, %v376
      %v394 = vpop.permute.xlu0 %393
      %395 = vset.pattern.permute.xlu0 0
      %396 = vperm.xlu0 %395, %v377
      %v397 = vpop.permute.xlu0 %396
      %398 = vset.pattern.permute.xlu0 0
      %399 = vperm.xlu0 %398, %v378
      %v400 = vpop.permute.xlu0 %399
      %401 = vset.pattern.permute.xlu0 0
      %402 = vperm.xlu0 %401, %v379
      %v403 = vpop.permute.xlu0 %402
      %v404 = vadd.s32 %v382, %v323
      %v405 = vadd.s32 %v385, %v324
      %v406 = vadd.s32 %v388, %v325
      %v407 = vadd.s32 %v391, %v326
      %v408 = vadd.s32 %v394, %v327
      %v409 = vadd.s32 %v397, %v328
      %v410 = vadd.s32 %v400, %v329
      %v411 = vadd.s32 %v403, %v330
      %vm412 = vcmp.lt.s32.totalorder %v404, 15
      %v413 = vsel %vm412, %v404, 15
      %vm414 = vcmp.lt.s32.totalorder %v405, 15
      %v415 = vsel %vm414, %v405, 15
      %vm416 = vcmp.lt.s32.totalorder %v406, 15
      %v417 = vsel %vm416, %v406, 15
      %vm418 = vcmp.lt.s32.totalorder %v407, 15
      %v419 = vsel %vm418, %v407, 15
      %vm420 = vcmp.lt.s32.totalorder %v408, 15
      %v421 = vsel %vm420, %v408, 15
      %vm422 = vcmp.lt.s32.totalorder %v409, 15
      %v423 = vsel %vm422, %v409, 15
      %vm424 = vcmp.lt.s32.totalorder %v410, 15
      %v425 = vsel %vm424, %v410, 15
      %vm426 = vcmp.lt.s32.totalorder %v411, 15
      %v427 = vsel %vm426, %v411, 15
      %v428 = vlaneseq
      %v429 = vand.u32 %v428, 127
      %430 = vset.pattern.permute.xlu0 0
      %431 = vperm.xlu0 %430, %v357
      %v432 = vpop.permute.xlu0 %431
      %433 = vset.pattern.permute.xlu0 0
      %434 = vperm.xlu0 %433, %v359
      %v435 = vpop.permute.xlu0 %434
      %436 = vset.pattern.permute.xlu0 0
      %437 = vperm.xlu0 %436, %v361
      %v438 = vpop.permute.xlu0 %437
      %439 = vset.pattern.permute.xlu0 0
      %440 = vperm.xlu0 %439, %v363
      %v441 = vpop.permute.xlu0 %440
      %442 = vset.pattern.permute.xlu0 0
      %443 = vperm.xlu0 %442, %v365
      %v444 = vpop.permute.xlu0 %443
      %445 = vset.pattern.permute.xlu0 0
      %446 = vperm.xlu0 %445, %v367
      %v447 = vpop.permute.xlu0 %446
      %448 = vset.pattern.permute.xlu0 0
      %449 = vperm.xlu0 %448, %v369
      %v450 = vpop.permute.xlu0 %449
      %451 = vset.pattern.permute.xlu0 0
      %452 = vperm.xlu0 %451, %v371
      %v453 = vpop.permute.xlu0 %452
      %vm454 = vcmp.eq.s32.totalorder %v429, %v432
      %vm455 = vcmp.eq.s32.totalorder %v429, %v435
      %vm456 = vcmp.eq.s32.totalorder %v429, %v438
      %vm457 = vcmp.eq.s32.totalorder %v429, %v441
      %vm458 = vcmp.eq.s32.totalorder %v429, %v444
      %vm459 = vcmp.eq.s32.totalorder %v429, %v447
      %vm460 = vcmp.eq.s32.totalorder %v429, %v450
      %vm461 = vcmp.eq.s32.totalorder %v429, %v453
      %v462 = vsel %vm454, %v315, 0.0
      %v463 = vsel %vm455, %v316, 0.0
      %v464 = vsel %vm456, %v317, 0.0
      %v465 = vsel %vm457, %v318, 0.0
      %v466 = vsel %vm458, %v319, 0.0
      %v467 = vsel %vm459, %v320, 0.0
      %v468 = vsel %vm460, %v321, 0.0
      %v469 = vsel %vm461, %v322, 0.0
      %vm470 = vcmask 523264
      %v471 = vsel %vm470, %v462, 0.0
      %472 = vadd.xlane.f32.xlu0 %v471
      %v473 = vpop.xlane.xlu0 %472
      %v474 = vsel %vm470, %v463, 0.0
      %475 = vadd.xlane.f32.xlu0 %v474
      %v476 = vpop.xlane.xlu0 %475
      %v477 = vsel %vm470, %v464, 0.0
      %478 = vadd.xlane.f32.xlu0 %v477
      %v479 = vpop.xlane.xlu0 %478
      %v480 = vsel %vm470, %v465, 0.0
      %481 = vadd.xlane.f32.xlu0 %v480
      %v482 = vpop.xlane.xlu0 %481
      %v483 = vsel %vm470, %v466, 0.0
      %484 = vadd.xlane.f32.xlu0 %v483
      %v485 = vpop.xlane.xlu0 %484
      %v486 = vsel %vm470, %v467, 0.0
      %487 = vadd.xlane.f32.xlu0 %v486
      %v488 = vpop.xlane.xlu0 %487
      %v489 = vsel %vm470, %v468, 0.0
      %490 = vadd.xlane.f32.xlu0 %v489
      %v491 = vpop.xlane.xlu0 %490
      %v492 = vsel %vm470, %v469, 0.0
      %493 = vadd.xlane.f32.xlu0 %v492
      %v494 = vpop.xlane.xlu0 %493
      %495 = vset.pattern.permute.xlu0 0
      %496 = vperm.xlu0 %495, %v413
      %v497 = vpop.permute.xlu0 %496
      %498 = vset.pattern.permute.xlu0 0
      %499 = vperm.xlu0 %498, %v415
      %v500 = vpop.permute.xlu0 %499
      %501 = vset.pattern.permute.xlu0 0
      %502 = vperm.xlu0 %501, %v417
      %v503 = vpop.permute.xlu0 %502
      %504 = vset.pattern.permute.xlu0 0
      %505 = vperm.xlu0 %504, %v419
      %v506 = vpop.permute.xlu0 %505
      %507 = vset.pattern.permute.xlu0 0
      %508 = vperm.xlu0 %507, %v421
      %v509 = vpop.permute.xlu0 %508
      %510 = vset.pattern.permute.xlu0 0
      %511 = vperm.xlu0 %510, %v423
      %v512 = vpop.permute.xlu0 %511
      %513 = vset.pattern.permute.xlu0 0
      %514 = vperm.xlu0 %513, %v425
      %v515 = vpop.permute.xlu0 %514
      %516 = vset.pattern.permute.xlu0 0
      %517 = vperm.xlu0 %516, %v427
      %v518 = vpop.permute.xlu0 %517
      %vm519 = vcmp.eq.s32.totalorder %v429, %v497
      %vm520 = vcmp.eq.s32.totalorder %v429, %v500
      %vm521 = vcmp.eq.s32.totalorder %v429, %v503
      %vm522 = vcmp.eq.s32.totalorder %v429, %v506
      %vm523 = vcmp.eq.s32.totalorder %v429, %v509
      %vm524 = vcmp.eq.s32.totalorder %v429, %v512
      %vm525 = vcmp.eq.s32.totalorder %v429, %v515
      %vm526 = vcmp.eq.s32.totalorder %v429, %v518
      %v527 = vsel %vm519, %v315, 0.0
      %v528 = vsel %vm520, %v316, 0.0
      %v529 = vsel %vm521, %v317, 0.0
      %v530 = vsel %vm522, %v318, 0.0
      %v531 = vsel %vm523, %v319, 0.0
      %v532 = vsel %vm524, %v320, 0.0
      %v533 = vsel %vm525, %v321, 0.0
      %v534 = vsel %vm526, %v322, 0.0
      %v535 = vsel %vm470, %v527, 0.0
      %536 = vadd.xlane.f32.xlu0 %v535
      %v537 = vpop.xlane.xlu0 %536
      %v538 = vsel %vm470, %v528, 0.0
      %539 = vadd.xlane.f32.xlu0 %v538
      %v540 = vpop.xlane.xlu0 %539
      %v541 = vsel %vm470, %v529, 0.0
      %542 = vadd.xlane.f32.xlu0 %v541
      %v543 = vpop.xlane.xlu0 %542
      %v544 = vsel %vm470, %v530, 0.0
      %545 = vadd.xlane.f32.xlu0 %v544
      %v546 = vpop.xlane.xlu0 %545
      %v547 = vsel %vm470, %v531, 0.0
      %548 = vadd.xlane.f32.xlu0 %v547
      %v549 = vpop.xlane.xlu0 %548
      %v550 = vsel %vm470, %v532, 0.0
      %551 = vadd.xlane.f32.xlu0 %v550
      %v552 = vpop.xlane.xlu0 %551
      %v553 = vsel %vm470, %v533, 0.0
      %554 = vadd.xlane.f32.xlu0 %v553
      %v555 = vpop.xlane.xlu0 %554
      %v556 = vsel %vm470, %v534, 0.0
      %557 = vadd.xlane.f32.xlu0 %v556
      %v558 = vpop.xlane.xlu0 %557
      %vm559 = vcmp.eq.s32.totalorder %v429, 0
      %v560 = vsel %vm559, %v473, 0.0
      %v561 = vsel %vm559, %v476, 0.0
      %v562 = vsel %vm559, %v479, 0.0
      %v563 = vsel %vm559, %v482, 0.0
      %v564 = vsel %vm559, %v485, 0.0
      %v565 = vsel %vm559, %v488, 0.0
      %v566 = vsel %vm559, %v491, 0.0
      %v567 = vsel %vm559, %v494, 0.0
      %v568 = vadd.f32 %v537, 0.0
      %v569 = vadd.f32 %v540, 0.0
      %v570 = vadd.f32 %v543, 0.0
      %v571 = vadd.f32 %v546, 0.0
      %v572 = vadd.f32 %v549, 0.0
      %v573 = vadd.f32 %v552, 0.0
      %v574 = vadd.f32 %v555, 0.0
      %v575 = vadd.f32 %v558, 0.0
      %v576 = vadd.s32 %v357, 16
      %v577 = vadd.s32 %v359, 16
      %v578 = vadd.s32 %v361, 16
      %v579 = vadd.s32 %v363, 16
      %v580 = vadd.s32 %v365, 16
      %v581 = vadd.s32 %v367, 16
      %v582 = vadd.s32 %v369, 16
      %v583 = vadd.s32 %v371, 16
      %v584 = vadd.s32 %v413, 16
      %v585 = vadd.s32 %v415, 16
      %v586 = vadd.s32 %v417, 16
      %v587 = vadd.s32 %v419, 16
      %v588 = vadd.s32 %v421, 16
      %v589 = vadd.s32 %v423, 16
      %v590 = vadd.s32 %v425, 16
      %v591 = vadd.s32 %v427, 16
      %592 = vset.pattern.permute.xlu0 1
      %593 = vperm.xlu0 %592, %v576
      %v594 = vpop.permute.xlu0 %593
      %595 = vset.pattern.permute.xlu0 1
      %596 = vperm.xlu0 %595, %v577
      %v597 = vpop.permute.xlu0 %596
      %598 = vset.pattern.permute.xlu0 1
      %599 = vperm.xlu0 %598, %v578
      %v600 = vpop.permute.xlu0 %599
      %601 = vset.pattern.permute.xlu0 1
      %602 = vperm.xlu0 %601, %v579
      %v603 = vpop.permute.xlu0 %602
      %604 = vset.pattern.permute.xlu0 1
      %605 = vperm.xlu0 %604, %v580
      %v606 = vpop.permute.xlu0 %605
      %607 = vset.pattern.permute.xlu0 1
      %608 = vperm.xlu0 %607, %v581
      %v609 = vpop.permute.xlu0 %608
      %610 = vset.pattern.permute.xlu0 1
      %611 = vperm.xlu0 %610, %v582
      %v612 = vpop.permute.xlu0 %611
      %613 = vset.pattern.permute.xlu0 1
      %614 = vperm.xlu0 %613, %v583
      %v615 = vpop.permute.xlu0 %614
      %vm616 = vcmp.eq.s32.totalorder %v429, %v594
      %vm617 = vcmp.eq.s32.totalorder %v429, %v597
      %vm618 = vcmp.eq.s32.totalorder %v429, %v600
      %vm619 = vcmp.eq.s32.totalorder %v429, %v603
      %vm620 = vcmp.eq.s32.totalorder %v429, %v606
      %vm621 = vcmp.eq.s32.totalorder %v429, %v609
      %vm622 = vcmp.eq.s32.totalorder %v429, %v612
      %vm623 = vcmp.eq.s32.totalorder %v429, %v615
      %v624 = vsel %vm616, %v315, 0.0
      %v625 = vsel %vm617, %v316, 0.0
      %v626 = vsel %vm618, %v317, 0.0
      %v627 = vsel %vm619, %v318, 0.0
      %v628 = vsel %vm620, %v319, 0.0
      %v629 = vsel %vm621, %v320, 0.0
      %v630 = vsel %vm622, %v321, 0.0
      %v631 = vsel %vm623, %v322, 0.0
      %v632 = vsel %vm470, %v624, 0.0
      %633 = vadd.xlane.f32.xlu0 %v632
      %v634 = vpop.xlane.xlu0 %633
      %v635 = vsel %vm470, %v625, 0.0
      %636 = vadd.xlane.f32.xlu0 %v635
      %v637 = vpop.xlane.xlu0 %636
      %v638 = vsel %vm470, %v626, 0.0
      %639 = vadd.xlane.f32.xlu0 %v638
      %v640 = vpop.xlane.xlu0 %639
      %v641 = vsel %vm470, %v627, 0.0
      %642 = vadd.xlane.f32.xlu0 %v641
      %v643 = vpop.xlane.xlu0 %642
      %v644 = vsel %vm470, %v628, 0.0
      %645 = vadd.xlane.f32.xlu0 %v644
      %v646 = vpop.xlane.xlu0 %645
      %v647 = vsel %vm470, %v629, 0.0
      %648 = vadd.xlane.f32.xlu0 %v647
      %v649 = vpop.xlane.xlu0 %648
      %v650 = vsel %vm470, %v630, 0.0
      %651 = vadd.xlane.f32.xlu0 %v650
      %v652 = vpop.xlane.xlu0 %651
      %v653 = vsel %vm470, %v631, 0.0
      %654 = vadd.xlane.f32.xlu0 %v653
      %v655 = vpop.xlane.xlu0 %654
      %656 = vset.pattern.permute.xlu0 1
      %657 = vperm.xlu0 %656, %v584
      %v658 = vpop.permute.xlu0 %657
      %659 = vset.pattern.permute.xlu0 1
      %660 = vperm.xlu0 %659, %v585
      %v661 = vpop.permute.xlu0 %660
      %662 = vset.pattern.permute.xlu0 1
      %663 = vperm.xlu0 %662, %v586
      %v664 = vpop.permute.xlu0 %663
      %665 = vset.pattern.permute.xlu0 1
      %666 = vperm.xlu0 %665, %v587
      %v667 = vpop.permute.xlu0 %666
      %668 = vset.pattern.permute.xlu0 1
      %669 = vperm.xlu0 %668, %v588
      %v670 = vpop.permute.xlu0 %669
      %671 = vset.pattern.permute.xlu0 1
      %672 = vperm.xlu0 %671, %v589
      %v673 = vpop.permute.xlu0 %672
      %674 = vset.pattern.permute.xlu0 1
      %675 = vperm.xlu0 %674, %v590
      %v676 = vpop.permute.xlu0 %675
      %677 = vset.pattern.permute.xlu0 1
      %678 = vperm.xlu0 %677, %v591
      %v679 = vpop.permute.xlu0 %678
      %vm680 = vcmp.eq.s32.totalorder %v429, %v658
      %vm681 = vcmp.eq.s32.totalorder %v429, %v661
      %vm682 = vcmp.eq.s32.totalorder %v429, %v664
      %vm683 = vcmp.eq.s32.totalorder %v429, %v667
      %vm684 = vcmp.eq.s32.totalorder %v429, %v670
      %vm685 = vcmp.eq.s32.totalorder %v429, %v673
      %vm686 = vcmp.eq.s32.totalorder %v429, %v676
      %vm687 = vcmp.eq.s32.totalorder %v429, %v679
      %v688 = vsel %vm680, %v315, 0.0
      %v689 = vsel %vm681, %v316, 0.0
      %v690 = vsel %vm682, %v317, 0.0
      %v691 = vsel %vm683, %v318, 0.0
      %v692 = vsel %vm684, %v319, 0.0
      %v693 = vsel %vm685, %v320, 0.0
      %v694 = vsel %vm686, %v321, 0.0
      %v695 = vsel %vm687, %v322, 0.0
      %v696 = vsel %vm470, %v688, 0.0
      %697 = vadd.xlane.f32.xlu0 %v696
      %v698 = vpop.xlane.xlu0 %697
      %v699 = vsel %vm470, %v689, 0.0
      %700 = vadd.xlane.f32.xlu0 %v699
      %v701 = vpop.xlane.xlu0 %700
      %v702 = vsel %vm470, %v690, 0.0
      %703 = vadd.xlane.f32.xlu0 %v702
      %v704 = vpop.xlane.xlu0 %703
      %v705 = vsel %vm470, %v691, 0.0
      %706 = vadd.xlane.f32.xlu0 %v705
      %v707 = vpop.xlane.xlu0 %706
      %v708 = vsel %vm470, %v692, 0.0
      %709 = vadd.xlane.f32.xlu0 %v708
      %v710 = vpop.xlane.xlu0 %709
      %v711 = vsel %vm470, %v693, 0.0
      %712 = vadd.xlane.f32.xlu0 %v711
      %v713 = vpop.xlane.xlu0 %712
      %v714 = vsel %vm470, %v694, 0.0
      %715 = vadd.xlane.f32.xlu0 %v714
      %v716 = vpop.xlane.xlu0 %715
      %v717 = vsel %vm470, %v695, 0.0
      %718 = vadd.xlane.f32.xlu0 %v717
      %v719 = vpop.xlane.xlu0 %718
      %vm720 = vcmp.eq.s32.totalorder %v429, 1
      %v721 = vsel %vm720, %v634, %v560
      %v722 = vsel %vm720, %v637, %v561
      %v723 = vsel %vm720, %v640, %v562
      %v724 = vsel %vm720, %v643, %v563
      %v725 = vsel %vm720, %v646, %v564
      %v726 = vsel %vm720, %v649, %v565
      %v727 = vsel %vm720, %v652, %v566
      %v728 = vsel %vm720, %v655, %v567
      %v729 = vadd.f32 %v568, %v698
      %v730 = vadd.f32 %v569, %v701
      %v731 = vadd.f32 %v570, %v704
      %v732 = vadd.f32 %v571, %v707
      %v733 = vadd.f32 %v572, %v710
      %v734 = vadd.f32 %v573, %v713
      %v735 = vadd.f32 %v574, %v716
      %v736 = vadd.f32 %v575, %v719
      %v737 = vadd.s32 %v357, 32
      %v738 = vadd.s32 %v359, 32
      %v739 = vadd.s32 %v361, 32
      %v740 = vadd.s32 %v363, 32
      %v741 = vadd.s32 %v365, 32
      %v742 = vadd.s32 %v367, 32
      %v743 = vadd.s32 %v369, 32
      %v744 = vadd.s32 %v371, 32
      %v745 = vadd.s32 %v413, 32
      %v746 = vadd.s32 %v415, 32
      %v747 = vadd.s32 %v417, 32
      %v748 = vadd.s32 %v419, 32
      %v749 = vadd.s32 %v421, 32
      %v750 = vadd.s32 %v423, 32
      %v751 = vadd.s32 %v425, 32
      %v752 = vadd.s32 %v427, 32
      %753 = vset.pattern.permute.xlu0 2
      %754 = vperm.xlu0 %753, %v737
      %v755 = vpop.permute.xlu0 %754
      %756 = vset.pattern.permute.xlu0 2
      %757 = vperm.xlu0 %756, %v738
      %v758 = vpop.permute.xlu0 %757
      %759 = vset.pattern.permute.xlu0 2
      %760 = vperm.xlu0 %759, %v739
      %v761 = vpop.permute.xlu0 %760
      %762 = vset.pattern.permute.xlu0 2
      %763 = vperm.xlu0 %762, %v740
      %v764 = vpop.permute.xlu0 %763
      %765 = vset.pattern.permute.xlu0 2
      %766 = vperm.xlu0 %765, %v741
      %v767 = vpop.permute.xlu0 %766
      %768 = vset.pattern.permute.xlu0 2
      %769 = vperm.xlu0 %768, %v742
      %v770 = vpop.permute.xlu0 %769
      %771 = vset.pattern.permute.xlu0 2
      %772 = vperm.xlu0 %771, %v743
      %v773 = vpop.permute.xlu0 %772
      %774 = vset.pattern.permute.xlu0 2
      %775 = vperm.xlu0 %774, %v744
      %v776 = vpop.permute.xlu0 %775
      %vm777 = vcmp.eq.s32.totalorder %v429, %v755
      %vm778 = vcmp.eq.s32.totalorder %v429, %v758
      %vm779 = vcmp.eq.s32.totalorder %v429, %v761
      %vm780 = vcmp.eq.s32.totalorder %v429, %v764
      %vm781 = vcmp.eq.s32.totalorder %v429, %v767
      %vm782 = vcmp.eq.s32.totalorder %v429, %v770
      %vm783 = vcmp.eq.s32.totalorder %v429, %v773
      %vm784 = vcmp.eq.s32.totalorder %v429, %v776
      %v785 = vsel %vm777, %v315, 0.0
      %v786 = vsel %vm778, %v316, 0.0
      %v787 = vsel %vm779, %v317, 0.0
      %v788 = vsel %vm780, %v318, 0.0
      %v789 = vsel %vm781, %v319, 0.0
      %v790 = vsel %vm782, %v320, 0.0
      %v791 = vsel %vm783, %v321, 0.0
      %v792 = vsel %vm784, %v322, 0.0
      %v793 = vsel %vm470, %v785, 0.0
      %794 = vadd.xlane.f32.xlu0 %v793
      %v795 = vpop.xlane.xlu0 %794
      %v796 = vsel %vm470, %v786, 0.0
      %797 = vadd.xlane.f32.xlu0 %v796
      %v798 = vpop.xlane.xlu0 %797
      %v799 = vsel %vm470, %v787, 0.0
      %800 = vadd.xlane.f32.xlu0 %v799
      %v801 = vpop.xlane.xlu0 %800
      %v802 = vsel %vm470, %v788, 0.0
      %803 = vadd.xlane.f32.xlu0 %v802
      %v804 = vpop.xlane.xlu0 %803
      %v805 = vsel %vm470, %v789, 0.0
      %806 = vadd.xlane.f32.xlu0 %v805
      %v807 = vpop.xlane.xlu0 %806
      %v808 = vsel %vm470, %v790, 0.0
      %809 = vadd.xlane.f32.xlu0 %v808
      %v810 = vpop.xlane.xlu0 %809
      %v811 = vsel %vm470, %v791, 0.0
      %812 = vadd.xlane.f32.xlu0 %v811
      %v813 = vpop.xlane.xlu0 %812
      %v814 = vsel %vm470, %v792, 0.0
      %815 = vadd.xlane.f32.xlu0 %v814
      %v816 = vpop.xlane.xlu0 %815
      %817 = vset.pattern.permute.xlu0 2
      %818 = vperm.xlu0 %817, %v745
      %v819 = vpop.permute.xlu0 %818
      %820 = vset.pattern.permute.xlu0 2
      %821 = vperm.xlu0 %820, %v746
      %v822 = vpop.permute.xlu0 %821
      %823 = vset.pattern.permute.xlu0 2
      %824 = vperm.xlu0 %823, %v747
      %v825 = vpop.permute.xlu0 %824
      %826 = vset.pattern.permute.xlu0 2
      %827 = vperm.xlu0 %826, %v748
      %v828 = vpop.permute.xlu0 %827
      %829 = vset.pattern.permute.xlu0 2
      %830 = vperm.xlu0 %829, %v749
      %v831 = vpop.permute.xlu0 %830
      %832 = vset.pattern.permute.xlu0 2
      %833 = vperm.xlu0 %832, %v750
      %v834 = vpop.permute.xlu0 %833
      %835 = vset.pattern.permute.xlu0 2
      %836 = vperm.xlu0 %835, %v751
      %v837 = vpop.permute.xlu0 %836
      %838 = vset.pattern.permute.xlu0 2
      %839 = vperm.xlu0 %838, %v752
      %v840 = vpop.permute.xlu0 %839
      %vm841 = vcmp.eq.s32.totalorder %v429, %v819
      %vm842 = vcmp.eq.s32.totalorder %v429, %v822
      %vm843 = vcmp.eq.s32.totalorder %v429, %v825
      %vm844 = vcmp.eq.s32.totalorder %v429, %v828
      %vm845 = vcmp.eq.s32.totalorder %v429, %v831
      %vm846 = vcmp.eq.s32.totalorder %v429, %v834
      %vm847 = vcmp.eq.s32.totalorder %v429, %v837
      %vm848 = vcmp.eq.s32.totalorder %v429, %v840
      %v849 = vsel %vm841, %v315, 0.0
      %v850 = vsel %vm842, %v316, 0.0
      %v851 = vsel %vm843, %v317, 0.0
      %v852 = vsel %vm844, %v318, 0.0
      %v853 = vsel %vm845, %v319, 0.0
      %v854 = vsel %vm846, %v320, 0.0
      %v855 = vsel %vm847, %v321, 0.0
      %v856 = vsel %vm848, %v322, 0.0
      %v857 = vsel %vm470, %v849, 0.0
      %858 = vadd.xlane.f32.xlu0 %v857
      %v859 = vpop.xlane.xlu0 %858
      %v860 = vsel %vm470, %v850, 0.0
      %861 = vadd.xlane.f32.xlu0 %v860
      %v862 = vpop.xlane.xlu0 %861
      %v863 = vsel %vm470, %v851, 0.0
      %864 = vadd.xlane.f32.xlu0 %v863
      %v865 = vpop.xlane.xlu0 %864
      %v866 = vsel %vm470, %v852, 0.0
      %867 = vadd.xlane.f32.xlu0 %v866
      %v868 = vpop.xlane.xlu0 %867
      %v869 = vsel %vm470, %v853, 0.0
      %870 = vadd.xlane.f32.xlu0 %v869
      %v871 = vpop.xlane.xlu0 %870
      %v872 = vsel %vm470, %v854, 0.0
      %873 = vadd.xlane.f32.xlu0 %v872
      %v874 = vpop.xlane.xlu0 %873
      %v875 = vsel %vm470, %v855, 0.0
      %876 = vadd.xlane.f32.xlu0 %v875
      %v877 = vpop.xlane.xlu0 %876
      %v878 = vsel %vm470, %v856, 0.0
      %879 = vadd.xlane.f32.xlu0 %v878
      %v880 = vpop.xlane.xlu0 %879
      %vm881 = vcmp.eq.s32.totalorder %v429, 2
      %v882 = vsel %vm881, %v795, %v721
      %v883 = vsel %vm881, %v798, %v722
      %v884 = vsel %vm881, %v801, %v723
      %v885 = vsel %vm881, %v804, %v724
      %v886 = vsel %vm881, %v807, %v725
      %v887 = vsel %vm881, %v810, %v726
      %v888 = vsel %vm881, %v813, %v727
      %v889 = vsel %vm881, %v816, %v728
      %v890 = vadd.f32 %v729, %v859
      %v891 = vadd.f32 %v730, %v862
      %v892 = vadd.f32 %v731, %v865
      %v893 = vadd.f32 %v732, %v868
      %v894 = vadd.f32 %v733, %v871
      %v895 = vadd.f32 %v734, %v874
      %v896 = vadd.f32 %v735, %v877
      %v897 = vadd.f32 %v736, %v880
      %v898 = vadd.s32 %v357, 48
      %v899 = vadd.s32 %v359, 48
      %v900 = vadd.s32 %v361, 48
      %v901 = vadd.s32 %v363, 48
      %v902 = vadd.s32 %v365, 48
      %v903 = vadd.s32 %v367, 48
      %v904 = vadd.s32 %v369, 48
      %v905 = vadd.s32 %v371, 48
      %v906 = vadd.s32 %v413, 48
      %v907 = vadd.s32 %v415, 48
      %v908 = vadd.s32 %v417, 48
      %v909 = vadd.s32 %v419, 48
      %v910 = vadd.s32 %v421, 48
      %v911 = vadd.s32 %v423, 48
      %v912 = vadd.s32 %v425, 48
      %v913 = vadd.s32 %v427, 48
      %914 = vset.pattern.permute.xlu0 3
      %915 = vperm.xlu0 %914, %v898
      %v916 = vpop.permute.xlu0 %915
      %917 = vset.pattern.permute.xlu0 3
      %918 = vperm.xlu0 %917, %v899
      %v919 = vpop.permute.xlu0 %918
      %920 = vset.pattern.permute.xlu0 3
      %921 = vperm.xlu0 %920, %v900
      %v922 = vpop.permute.xlu0 %921
      %923 = vset.pattern.permute.xlu0 3
      %924 = vperm.xlu0 %923, %v901
      %v925 = vpop.permute.xlu0 %924
      %926 = vset.pattern.permute.xlu0 3
      %927 = vperm.xlu0 %926, %v902
      %v928 = vpop.permute.xlu0 %927
      %929 = vset.pattern.permute.xlu0 3
      %930 = vperm.xlu0 %929, %v903
      %v931 = vpop.permute.xlu0 %930
      %932 = vset.pattern.permute.xlu0 3
      %933 = vperm.xlu0 %932, %v904
      %v934 = vpop.permute.xlu0 %933
      %935 = vset.pattern.permute.xlu0 3
      %936 = vperm.xlu0 %935, %v905
      %v937 = vpop.permute.xlu0 %936
      %vm938 = vcmp.eq.s32.totalorder %v429, %v916
      %vm939 = vcmp.eq.s32.totalorder %v429, %v919
      %vm940 = vcmp.eq.s32.totalorder %v429, %v922
      %vm941 = vcmp.eq.s32.totalorder %v429, %v925
      %vm942 = vcmp.eq.s32.totalorder %v429, %v928
      %vm943 = vcmp.eq.s32.totalorder %v429, %v931
      %vm944 = vcmp.eq.s32.totalorder %v429, %v934
      %vm945 = vcmp.eq.s32.totalorder %v429, %v937
      %v946 = vsel %vm938, %v315, 0.0
      %v947 = vsel %vm939, %v316, 0.0
      %v948 = vsel %vm940, %v317, 0.0
      %v949 = vsel %vm941, %v318, 0.0
      %v950 = vsel %vm942, %v319, 0.0
      %v951 = vsel %vm943, %v320, 0.0
      %v952 = vsel %vm944, %v321, 0.0
      %v953 = vsel %vm945, %v322, 0.0
      %v954 = vsel %vm470, %v946, 0.0
      %955 = vadd.xlane.f32.xlu0 %v954
      %v956 = vpop.xlane.xlu0 %955
      %v957 = vsel %vm470, %v947, 0.0
      %958 = vadd.xlane.f32.xlu0 %v957
      %v959 = vpop.xlane.xlu0 %958
      %v960 = vsel %vm470, %v948, 0.0
      %961 = vadd.xlane.f32.xlu0 %v960
      %v962 = vpop.xlane.xlu0 %961
      %v963 = vsel %vm470, %v949, 0.0
      %964 = vadd.xlane.f32.xlu0 %v963
      %v965 = vpop.xlane.xlu0 %964
      %v966 = vsel %vm470, %v950, 0.0
      %967 = vadd.xlane.f32.xlu0 %v966
      %v968 = vpop.xlane.xlu0 %967
      %v969 = vsel %vm470, %v951, 0.0
      %970 = vadd.xlane.f32.xlu0 %v969
      %v971 = vpop.xlane.xlu0 %970
      %v972 = vsel %vm470, %v952, 0.0
      %973 = vadd.xlane.f32.xlu0 %v972
      %v974 = vpop.xlane.xlu0 %973
      %v975 = vsel %vm470, %v953, 0.0
      %976 = vadd.xlane.f32.xlu0 %v975
      %v977 = vpop.xlane.xlu0 %976
      %978 = vset.pattern.permute.xlu0 3
      %979 = vperm.xlu0 %978, %v906
      %v980 = vpop.permute.xlu0 %979
      %981 = vset.pattern.permute.xlu0 3
      %982 = vperm.xlu0 %981, %v907
      %v983 = vpop.permute.xlu0 %982
      %984 = vset.pattern.permute.xlu0 3
      %985 = vperm.xlu0 %984, %v908
      %v986 = vpop.permute.xlu0 %985
      %987 = vset.pattern.permute.xlu0 3
      %988 = vperm.xlu0 %987, %v909
      %v989 = vpop.permute.xlu0 %988
      %990 = vset.pattern.permute.xlu0 3
      %991 = vperm.xlu0 %990, %v910
      %v992 = vpop.permute.xlu0 %991
      %993 = vset.pattern.permute.xlu0 3
      %994 = vperm.xlu0 %993, %v911
      %v995 = vpop.permute.xlu0 %994
      %996 = vset.pattern.permute.xlu0 3
      %997 = vperm.xlu0 %996, %v912
      %v998 = vpop.permute.xlu0 %997
      %999 = vset.pattern.permute.xlu0 3
      %1000 = vperm.xlu0 %999, %v913
      %v1001 = vpop.permute.xlu0 %1000
      %vm1002 = vcmp.eq.s32.totalorder %v429, %v980
      %vm1003 = vcmp.eq.s32.totalorder %v429, %v983
      %vm1004 = vcmp.eq.s32.totalorder %v429, %v986
      %vm1005 = vcmp.eq.s32.totalorder %v429, %v989
      %vm1006 = vcmp.eq.s32.totalorder %v429, %v992
      %vm1007 = vcmp.eq.s32.totalorder %v429, %v995
      %vm1008 = vcmp.eq.s32.totalorder %v429, %v998
      %vm1009 = vcmp.eq.s32.totalorder %v429, %v1001
      %v1010 = vsel %vm1002, %v315, 0.0
      %v1011 = vsel %vm1003, %v316, 0.0
      %v1012 = vsel %vm1004, %v317, 0.0
      %v1013 = vsel %vm1005, %v318, 0.0
      %v1014 = vsel %vm1006, %v319, 0.0
      %v1015 = vsel %vm1007, %v320, 0.0
      %v1016 = vsel %vm1008, %v321, 0.0
      %v1017 = vsel %vm1009, %v322, 0.0
      %v1018 = vsel %vm470, %v1010, 0.0
      %1019 = vadd.xlane.f32.xlu0 %v1018
      %v1020 = vpop.xlane.xlu0 %1019
      %v1021 = vsel %vm470, %v1011, 0.0
      %1022 = vadd.xlane.f32.xlu0 %v1021
      %v1023 = vpop.xlane.xlu0 %1022
      %v1024 = vsel %vm470, %v1012, 0.0
      %1025 = vadd.xlane.f32.xlu0 %v1024
      %v1026 = vpop.xlane.xlu0 %1025
      %v1027 = vsel %vm470, %v1013, 0.0
      %1028 = vadd.xlane.f32.xlu0 %v1027
      %v1029 = vpop.xlane.xlu0 %1028
      %v1030 = vsel %vm470, %v1014, 0.0
      %1031 = vadd.xlane.f32.xlu0 %v1030
      %v1032 = vpop.xlane.xlu0 %1031
      %v1033 = vsel %vm470, %v1015, 0.0
      %1034 = vadd.xlane.f32.xlu0 %v1033
      %v1035 = vpop.xlane.xlu0 %1034
      %v1036 = vsel %vm470, %v1016, 0.0
      %1037 = vadd.xlane.f32.xlu0 %v1036
      %v1038 = vpop.xlane.xlu0 %1037
      %v1039 = vsel %vm470, %v1017, 0.0
      %1040 = vadd.xlane.f32.xlu0 %v1039
      %v1041 = vpop.xlane.xlu0 %1040
      %vm1042 = vcmp.eq.s32.totalorder %v429, 3
      %v1043 = vsel %vm1042, %v956, %v882
      %v1044 = vsel %vm1042, %v959, %v883
      %v1045 = vsel %vm1042, %v962, %v884
      %v1046 = vsel %vm1042, %v965, %v885
      %v1047 = vsel %vm1042, %v968, %v886
      %v1048 = vsel %vm1042, %v971, %v887
      %v1049 = vsel %vm1042, %v974, %v888
      %v1050 = vsel %vm1042, %v977, %v889
      %v1051 = vadd.f32 %v890, %v1020
      %v1052 = vadd.f32 %v891, %v1023
      %v1053 = vadd.f32 %v892, %v1026
      %v1054 = vadd.f32 %v893, %v1029
      %v1055 = vadd.f32 %v894, %v1032
      %v1056 = vadd.f32 %v895, %v1035
      %v1057 = vadd.f32 %v896, %v1038
      %v1058 = vadd.f32 %v897, %v1041
      %v1059 = vmax.f32 %v1043, 0.0
      %v1060 = vmax.f32 %v1044, 0.0
      %v1061 = vmax.f32 %v1045, 0.0
      %v1062 = vmax.f32 %v1046, 0.0
      %v1063 = vmax.f32 %v1047, 0.0
      %v1064 = vmax.f32 %v1048, 0.0
      %v1065 = vmax.f32 %v1049, 0.0
      %v1066 = vmax.f32 %v1050, 0.0
      %vm1067 = vcmask 31744
      %v1068 = vsel %vm1067, %v1059, 0.0
      %1069 = vadd.xlane.f32.xlu0 %v1068
      %v1070 = vpop.xlane.xlu0 %1069
      %v1071 = vsel %vm1067, %v1060, 0.0
      %1072 = vadd.xlane.f32.xlu0 %v1071
      %v1073 = vpop.xlane.xlu0 %1072
      %v1074 = vsel %vm1067, %v1061, 0.0
      %1075 = vadd.xlane.f32.xlu0 %v1074
      %v1076 = vpop.xlane.xlu0 %1075
      %v1077 = vsel %vm1067, %v1062, 0.0
      %1078 = vadd.xlane.f32.xlu0 %v1077
      %v1079 = vpop.xlane.xlu0 %1078
      %v1080 = vsel %vm1067, %v1063, 0.0
      %1081 = vadd.xlane.f32.xlu0 %v1080
      %v1082 = vpop.xlane.xlu0 %1081
      %v1083 = vsel %vm1067, %v1064, 0.0
      %1084 = vadd.xlane.f32.xlu0 %v1083
      %v1085 = vpop.xlane.xlu0 %1084
      %v1086 = vsel %vm1067, %v1065, 0.0
      %1087 = vadd.xlane.f32.xlu0 %v1086
      %v1088 = vpop.xlane.xlu0 %1087
      %v1089 = vsel %vm1067, %v1066, 0.0
      %1090 = vadd.xlane.f32.xlu0 %v1089
      %v1091 = vpop.xlane.xlu0 %1090
      %v1092 = vadd.f32 %v1070, 1e-15
      %v1093 = vadd.f32 %v1073, 1e-15
      %v1094 = vadd.f32 %v1076, 1e-15
      %v1095 = vadd.f32 %v1079, 1e-15
      %v1096 = vadd.f32 %v1082, 1e-15
      %v1097 = vadd.f32 %v1085, 1e-15
      %v1098 = vadd.f32 %v1088, 1e-15
      %v1099 = vadd.f32 %v1091, 1e-15
      %v1100 = vrcp.pop %v1092
      %v1101 = vrcp.pop %v1093
      %v1102 = vrcp.pop %v1094
      %v1103 = vrcp.pop %v1095
      %v1104 = vrcp.pop %v1096
      %v1105 = vrcp.pop %v1097
      %v1106 = vrcp.pop %v1098
      %v1107 = vrcp.pop %v1099
      %v1108 = vmul.f32 %v339, %v1100
      %v1109 = vmul.f32 %v340, %v1101
      %v1110 = vmul.f32 %v341, %v1102
      %v1111 = vmul.f32 %v342, %v1103
      %v1112 = vmul.f32 %v343, %v1104
      %v1113 = vmul.f32 %v344, %v1105
      %v1114 = vmul.f32 %v345, %v1106
      %v1115 = vmul.f32 %v346, %v1107
      %v1116 = vmin.f32 %v1108, 1.0
      %v1117 = vmin.f32 %v1109, 1.0
      %v1118 = vmin.f32 %v1110, 1.0
      %v1119 = vmin.f32 %v1111, 1.0
      %v1120 = vmin.f32 %v1112, 1.0
      %v1121 = vmin.f32 %v1113, 1.0
      %v1122 = vmin.f32 %v1114, 1.0
      %v1123 = vmin.f32 %v1115, 1.0
      %1125 = vset.pattern.permute.xlu0 0
      %1126 = vperm.xlu0 %1125, %v1116
      %v1127 = vpop.permute.xlu0 %1126
      %1130 = vset.pattern.permute.xlu0 0
      %1131 = vperm.xlu0 %1130, %v1117
      %v1132 = vpop.permute.xlu0 %1131
      %1135 = vset.pattern.permute.xlu0 0
      %1136 = vperm.xlu0 %1135, %v1118
      %v1137 = vpop.permute.xlu0 %1136
      %1140 = vset.pattern.permute.xlu0 0
      %1141 = vperm.xlu0 %1140, %v1119
      %v1142 = vpop.permute.xlu0 %1141
      %1145 = vset.pattern.permute.xlu0 0
      %1146 = vperm.xlu0 %1145, %v1120
      %v1147 = vpop.permute.xlu0 %1146
      %1150 = vset.pattern.permute.xlu0 0
      %1151 = vperm.xlu0 %1150, %v1121
      %v1152 = vpop.permute.xlu0 %1151
      %1155 = vset.pattern.permute.xlu0 0
      %1156 = vperm.xlu0 %1155, %v1122
      %v1157 = vpop.permute.xlu0 %1156
      %1160 = vset.pattern.permute.xlu0 0
      %1161 = vperm.xlu0 %1160, %v1123
      %v1162 = vpop.permute.xlu0 %1161
      %v1164 = vmul.f32 %v1059, %v1127
      %v1165 = vmul.f32 %v1060, %v1132
      %v1166 = vmul.f32 %v1061, %v1137
      %v1167 = vmul.f32 %v1062, %v1142
      %v1168 = vmul.f32 %v1063, %v1147
      %v1169 = vmul.f32 %v1064, %v1152
      %v1170 = vmul.f32 %v1065, %v1157
      %v1171 = vmul.f32 %v1066, %v1162
      %1172 = vst.msk [vmem:[%s304] sm:$0xff] %vm1067, %v1164
      %1173 = vst.msk [vmem:[%s304 + $0x8] sm:$0xff] %vm1067, %v1165
      %1174 = vst.msk [vmem:[%s304 + $0x10] sm:$0xff] %vm1067, %v1166
      %1175 = vst.msk [vmem:[%s304 + $0x18] sm:$0xff] %vm1067, %v1167
      %1176 = vst.msk [vmem:[%s304 + $0x20] sm:$0xff] %vm1067, %v1168
      %1177 = vst.msk [vmem:[%s304 + $0x28] sm:$0xff] %vm1067, %v1169
      %1178 = vst.msk [vmem:[%s304 + $0x30] sm:$0xff] %vm1067, %v1170
      %1179 = vst.msk [vmem:[%s304 + $0x38] sm:$0xff] %vm1067, %v1171
      %v1180 = vmax.f32 %v1051, 0.0
      %v1181 = vmax.f32 %v1052, 0.0
      %v1182 = vmax.f32 %v1053, 0.0
      %v1183 = vmax.f32 %v1054, 0.0
      %v1184 = vmax.f32 %v1055, 0.0
      %v1185 = vmax.f32 %v1056, 0.0
      %v1186 = vmax.f32 %v1057, 0.0
      %v1187 = vmax.f32 %v1058, 0.0
      %vm1188 = vcmask 7168
      %1189 = vst.msk [vmem:[%s310] sm:$0xff] %vm1188, %v1180
      %1190 = vst.msk [vmem:[%s310 + $0x8] sm:$0xff] %vm1188, %v1181
      %1191 = vst.msk [vmem:[%s310 + $0x10] sm:$0xff] %vm1188, %v1182
      %1192 = vst.msk [vmem:[%s310 + $0x18] sm:$0xff] %vm1188, %v1183
      %1193 = vst.msk [vmem:[%s310 + $0x20] sm:$0xff] %vm1188, %v1184
      %1194 = vst.msk [vmem:[%s310 + $0x28] sm:$0xff] %vm1188, %v1185
      %1195 = vst.msk [vmem:[%s310 + $0x30] sm:$0xff] %vm1188, %v1186
      %1196 = vst.msk [vmem:[%s310 + $0x38] sm:$0xff] %vm1188, %v1187
      %s1197 = smul.u32 8, %s21
      %p1198 = scmp.lt.s32.totalorder %s1197, 31
      %s1199 = scalar_select %p1198, %s1197, 31
      %s1200 = smul.addr %s1199, 8
      %s1201 = scalar_lea.vmem %s6, %s1200
      %s1202 = smul.u32 8, %s21
      %p1203 = scmp.lt.s32.totalorder %s1202, 31
      %s1204 = scalar_select %p1203, %s1202, 31
      %s1205 = smul.addr %s1204, 8
      %s1206 = scalar_lea.vmem %s7, %s1205
      // Predicated region
      $region37: #{tpu_custom_call.1} parent=35 // pred_check
        %p1207 = pneg %p143
      $region38: #{tpu_custom_call.1} parent=35 // pred_check_branch
        %1209 = sbr.rel (%p1207) target = $region40
      $region39: #{tpu_custom_call.1} parent=35 // pred_region
        %s1210 = smul.u32 8, %s21
      $region40: #{tpu_custom_call.1} parent=35 // pred_fallthru
        _
      // Predicated region
      $region41: #{tpu_custom_call.1} parent=35 // pred_check
        %p1211 = pneg %p169
      $region42: #{tpu_custom_call.1} parent=35 // pred_check_branch
        %1213 = sbr.rel (%p1211) target = $region44
      $region43: #{tpu_custom_call.1} parent=35 // pred_region
        %s1214 = smul.u32 8, %s21
      $region44: #{tpu_custom_call.1} parent=35 // pred_fallthru
        _
    $region36: #{tpu_custom_call.1} parent=5 // pred_fallthru
      _
    %p1215 = scmp.le.s32.totalorder 2, %s16
    // Predicated region
    $region45: #{tpu_custom_call.1} parent=5 // pred_check
      %p1216 = pneg %p1215
    $region46: #{tpu_custom_call.1} parent=5 // pred_check_branch
      %1218 = sbr.rel (%p1216) target = $region48
    $region47: #{tpu_custom_call.1} parent=5 // pred_region
      %s1219 = ssub.s32 %s16, 2
      // Predicated region
      $region49: #{tpu_custom_call.1} parent=47 // pred_check
        %p1220 = pneg %p149
      $region50: #{tpu_custom_call.1} parent=47 // pred_check_branch
        %1222 = sbr.rel (%p1220) target = $region52
      $region51: #{tpu_custom_call.1} parent=47 // pred_region
        %s1223 = smul.u32 8, %s22
        %p1224 = scmp.lt.s32.totalorder %s1223, 31
        %s1225 = scalar_select %p1224, %s1223, 31
        %s1226 = smul.addr %s1225, 8
        %s1227 = scalar_lea.vmem %s6, %s1226
      $region52: #{tpu_custom_call.1} parent=47 // pred_fallthru
        _
      // Predicated region
      $region53: #{tpu_custom_call.1} parent=47 // pred_check
        %p1228 = pneg %p175
      $region54: #{tpu_custom_call.1} parent=47 // pred_check_branch
        %1230 = sbr.rel (%p1228) target = $region56
      $region55: #{tpu_custom_call.1} parent=47 // pred_region
        %s1231 = smul.u32 8, %s22
        %p1232 = scmp.lt.s32.totalorder %s1231, 31
        %s1233 = scalar_select %p1232, %s1231, 31
        %s1234 = smul.addr %s1233, 8
        %s1235 = scalar_lea.vmem %s7, %s1234
      $region56: #{tpu_custom_call.1} parent=47 // pred_fallthru
        _
    $region48: #{tpu_custom_call.1} parent=5 // pred_fallthru
      _
  $region6: #{tpu_custom_call.1} parent=0 // loop_footer
    %s20 = sadd.s32 1, %s16
  $region7: #{tpu_custom_call.1} parent=0 // loop_footer_branch
    %15 = sbr.rel target = $region3
  $region8: #{tpu_custom_call.1} parent=0 // loop_exit
    _

</llo_original>
